<compile_context>
chip_gen: v7x
topology: tpu7x:2x2x1
jax: 0.10.0
libtpu: 0.0.40
codegen_flags: <defaults>
</compile_context>

<pallas_src>
import functools

import jax
import jax.numpy as jnp
from jax import lax
from jax.experimental import pallas as pl
from jax.experimental.pallas import tpu as pltpu


# ---------------------------------------------------------------------------
# Fused loss kernel.
#   grid = (num_G_blocks,)   -- reduction over the feature axis of out_exp.
#   Accumulators (VMEM scratch):
#     w12_acc (B,B): Gram matrix  sum_g out_exp[:,g] out_exp[:,g]^T
#     kl_acc  (B,1): per-row sum of KLDiv pointwise terms (lane reduce only)
#   Finalize (last grid step): weighted CE, KL batchmean, pairwise cosine BCE.
# ---------------------------------------------------------------------------
def _loss_kernel(out_label_ref, label_ref, weight_ref, out_exp_ref, true_exp_ref,
                 out_ref, w12_acc, kl_acc, *,
                 lambda_1, lambda_2, inv_b, inv_bb, cos_eps,
                 g_total, block_g, ragged):
    g = pl.program_id(0)

    @pl.when(g == 0)
    def _init():
        w12_acc[...] = jnp.zeros_like(w12_acc)
        kl_acc[...] = jnp.zeros_like(kl_acc)

    # Load native-dtype chunks and widen to f32 in-register.
    xg = out_exp_ref[...].astype(jnp.float32)    # (B, TG) chunk of out_exp
    tg = true_exp_ref[...].astype(jnp.float32)   # (B, TG) chunk of true_exp

    if ragged:
        # Mask the tail of the (possibly OOB) last block against the static G.
        lane = lax.broadcasted_iota(jnp.int32, xg.shape, 1)
        valid = (g * block_g + lane) < g_total
        xg = jnp.where(valid, xg, 0.0)
        tg = jnp.where(valid, tg, 0.0)

    # Gram accumulation: w12 += X_g @ X_g.T  (MXU, transposed contraction
    # expressed in-kernel -- no transposed operand is shipped from HBM).
    w12_acc[...] += lax.dot_general(
        xg, xg, dimension_numbers=(((1,), (1,)), ((), ())),
        preferred_element_type=jnp.float32)

    # KLDivLoss (log_target=False): target * (log(target) - input); select
    # semantics make the target==0 branch (and the masked tail) contribute 0.
    kl = jnp.where(tg > 0, tg * (jnp.log(tg) - xg), 0.0)
    kl_acc[...] += jnp.sum(kl, axis=1, keepdims=True)          # lane reduce only

    @pl.when(g == pl.num_programs(0) - 1)
    def _finalize():
        # ---- weighted cross entropy (reduction='mean') --------------------
        logits = out_label_ref[...]                           # (B, C) f32
        labels = label_ref[...]                               # (B, 1) int32
        B, C = logits.shape
        cls = lax.broadcasted_iota(jnp.int32, (B, C), 1)
        onehot = (cls == labels).astype(jnp.float32)          # (B, C)
        m = jnp.max(logits, axis=1, keepdims=True)
        z = logits - m
        lse = jnp.log(jnp.sum(jnp.exp(z), axis=1, keepdims=True))
        logp = z - lse
        picked = jnp.sum(onehot * logp, axis=1, keepdims=True)            # (B,1)
        w_y = jnp.sum(onehot * weight_ref[...], axis=1, keepdims=True)    # (B,1)
        label_loss = (jnp.sum(-w_y * picked, axis=0, keepdims=True)
                      / jnp.sum(w_y, axis=0, keepdims=True))              # (1,1)

        # ---- KLDiv, reduction='batchmean' ---------------------------------
        exp_loss = jnp.sum(kl_acc[...], axis=0, keepdims=True) * inv_b    # (1,1)

        # ---- pairwise cosine BCE ------------------------------------------
        w12 = w12_acc[...]                                                # (B,B)
        rows = lax.broadcasted_iota(jnp.int32, (B, B), 0)
        cols = lax.broadcasted_iota(jnp.int32, (B, B), 1)
        eye = (rows == cols).astype(jnp.float32)
        # squared row norms live on the Gram diagonal -> no extra matmul
        sq_col = jnp.sum(w12 * eye, axis=1, keepdims=True)                # (B,1)
        sq_row = jnp.sum(w12 * eye, axis=0, keepdims=True)                # (1,B)
        # torch.nn.CosineSimilarity(eps): clamp EACH norm separately.
        n_col = jnp.maximum(jnp.sqrt(jnp.maximum(sq_col, 0.0)), cos_eps)
        n_row = jnp.maximum(jnp.sqrt(jnp.maximum(sq_row, 0.0)), cos_eps)
        cos = w12 / (n_col * n_row)                                       # (B,B)

        # label_mat[i,j] = 1 iff true_label[i] == true_label[j]
        label_mat = lax.dot_general(
            onehot, onehot, dimension_numbers=(((1,), (1,)), ((), ())),
            preferred_element_type=jnp.float32)                           # (B,B)
        mask_upper = (cols > rows).astype(jnp.float32)                    # triu k=1

        lp = (-label_mat * jnp.log(jnp.clip(cos, 1e-10, 1.0))
              - (1.0 - label_mat) * jnp.log(jnp.clip(1.0 - cos, 1e-10, 1.0)))
        pair = jnp.sum(jnp.sum(mask_upper * lp, axis=1, keepdims=True),
                       axis=0, keepdims=True) * inv_bb                    # (1,1)

        total = label_loss + lambda_1 * exp_loss + lambda_2 * pair        # (1,1)

        # Single (1,4) store: [total, label, exp, pairwise]
        idx = lax.broadcasted_iota(jnp.int32, (1, 4), 1)
        out_ref[...] = (jnp.where(idx == 0, total, 0.0)
                        + jnp.where(idx == 1, label_loss, 0.0)
                        + jnp.where(idx == 2, exp_loss, 0.0)
                        + jnp.where(idx == 3, pair, 0.0))


def my_loss_pairwise(out_label, out_exp, true_label, true_exp, weight_label,
                     lambda_1, lambda_2, *, block_g=None,
                     vmem_budget_bytes=24 << 20):
    """Returns (total_loss, label_loss, exp_loss, loss_pairwise) as scalars."""
    out_label = jnp.asarray(out_label, jnp.float32)
    out_exp = jnp.asarray(out_exp)        # keep native dtype (bf16 stays bf16)
    true_exp = jnp.asarray(true_exp)      # widened on load inside the kernel
    B, C = out_label.shape
    G = out_exp.shape[1]
    itemsize = int(out_exp.dtype.itemsize) + int(true_exp.dtype.itemsize)

    # ---- choose the G tile from a VMEM budget (no HBM padding) ------------
    if block_g is None:
        fixed = 4 * B * B + 4 * B + 2 * (4 * B * C + 4 * B + 4 * C) + 4096
        stream_budget = max(vmem_budget_bytes - fixed, 1 << 20)
        cap = stream_budget // (2 * B * itemsize)     # 2 pipeline buffers/input
        cap = max(128, (cap // 128) * 128)
        block_g = int(min(cap, 8192))
    if block_g >= G:
        block_g = G                                   # single step, full axis
    else:
        block_g = max(128, (block_g // 128) * 128)
        if block_g >= G:
            block_g = G
    nblk = pl.cdiv(G, block_g)
    ragged = (G % block_g) != 0

    labels2d = jnp.asarray(true_label, jnp.int32).reshape(B, 1)
    weight2d = jnp.asarray(weight_label, jnp.float32).reshape(1, C)

    kernel = functools.partial(
        _loss_kernel, lambda_1=float(lambda_1), lambda_2=float(lambda_2),
        inv_b=1.0 / B, inv_bb=1.0 / (B * B), cos_eps=1e-6,
        g_total=G, block_g=block_g, ragged=ragged)

    # VMEM accounting: streamed inputs (double-buffered) + Gram + residents.
    need = 2 * B * block_g * itemsize + 4 * B * B + 4 * B \
        + 2 * (4 * B * C + 4 * B + 4 * C) + 4096
    vmem_limit = int(min(max(2 * need, 32 << 20), 56 << 20))

    cost = pl.CostEstimate(
        flops=int(2 * B * B * G + 6 * B * G + 30 * B * B + 12 * B * C),
        transcendentals=int(B * G + 3 * B * B + B * C),
        bytes_accessed=int(B * G * itemsize + B * C * 4 + B * 4 + C * 4 + 16))

    out = pl.pallas_call(
        kernel,
        out_shape=jax.ShapeDtypeStruct((1, 4), jnp.float32),
        grid=(nblk,),
        in_specs=[
            pl.BlockSpec((B, C), lambda g: (0, 0)),        # logits (resident)
            pl.BlockSpec((B, 1), lambda g: (0, 0)),        # labels (resident)
            pl.BlockSpec((1, C), lambda g: (0, 0)),        # CE class weights
            pl.BlockSpec((B, block_g), lambda g: (0, g)),  # out_exp chunk
            pl.BlockSpec((B, block_g), lambda g: (0, g)),  # true_exp chunk
        ],
        out_specs=pl.BlockSpec((1, 4), lambda g: (0, 0)),
        scratch_shapes=[
            pltpu.VMEM((B, B), jnp.float32),   # Gram accumulator
            pltpu.VMEM((B, 1), jnp.float32),   # per-row KL accumulator
        ],
        compiler_params=pltpu.CompilerParams(
            dimension_semantics=("arbitrary",),            # reduction over G
            vmem_limit_bytes=vmem_limit),
        cost_estimate=cost,
    )(out_label, labels2d, weight2d, out_exp, true_exp)

    return (out[0, 0], out[0, 1], out[0, 2], out[0, 3])


# ---------------------------------------------------------------------------
# Pure-JAX reference (mirrors the PyTorch module) for validation.
# ---------------------------------------------------------------------------
def _reference(out_label, out_exp, true_label, true_exp, weight, l1, l2):
    B = out_label.shape[0]
    logp = jax.nn.log_softmax(out_label, axis=-1)
    picked = jnp.take_along_axis(logp, true_label[:, None], axis=1)[:, 0]
    w_y = weight[true_label]
    label_loss = jnp.sum(-w_y * picked) / jnp.sum(w_y)

    kl = jnp.where(true_exp > 0, true_exp * (jnp.log(true_exp) - out_exp), 0.0)
    exp_loss = jnp.sum(kl) / B

    w12 = out_exp @ out_exp.T
    norm = jnp.maximum(jnp.sqrt(jnp.sum(out_exp * out_exp, axis=-1)), 1e-6)
    cos = w12 / (norm[:, None] * norm[None, :])
    label_mat = (true_label[:, None] == true_label[None, :]).astype(jnp.float32)
    mask = jnp.triu(jnp.ones((B, B), jnp.float32), k=1)
    lp = (-label_mat * jnp.log(jnp.clip(cos, 1e-10, 1.0))
          - (1.0 - label_mat) * jnp.log(jnp.clip(1.0 - cos, 1e-10, 1.0)))
    pair = jnp.mean(mask * lp)
    total = label_loss + l1 * exp_loss + l2 * pair
    return total, label_loss, exp_loss, pair


def _check(outs, refs):
    for got, want in zip(outs, refs):
        assert bool(jnp.isfinite(got)), got
        assert bool(jnp.allclose(got, want, rtol=2e-3, atol=2e-3)), (got, want)


if __name__ == "__main__":
    key = jax.random.PRNGKey(0)
    B, C = 8, 5
    lambda_1, lambda_2 = 0.7, 0.3
    ks = jax.random.split(key, 6)

    out_label = jax.random.normal(ks[0], (B, C), dtype=jnp.float32)
    true_label = jax.random.randint(ks[2], (B,), 0, C, dtype=jnp.int32)
    weight_label = jax.random.uniform(ks[4], (C,), minval=0.5, maxval=1.5,
                                      dtype=jnp.float32)

    # ---- case 1: G=256, auto block_g -> single grid step -------------------
    G1 = 256
    out_exp1 = 0.5 + 0.3 * jax.random.normal(ks[1], (B, G1), dtype=jnp.float32)
    true_exp1 = jax.nn.softmax(
        jax.random.normal(ks[3], (B, G1), dtype=jnp.float32), axis=-1)
    outs1 = jax.block_until_ready(my_loss_pairwise(
        out_label, out_exp1, true_label, true_exp1, weight_label,
        lambda_1, lambda_2))
    _check(outs1, _reference(out_label, out_exp1, true_label, true_exp1,
                             weight_label, lambda_1, lambda_2))

    # ---- case 2: ragged G=300 with forced block_g=128 (in-kernel masking) --
    G2 = 300
    out_exp2 = 0.5 + 0.3 * jax.random.normal(ks[5], (B, G2), dtype=jnp.float32)
    true_exp2 = jax.nn.softmax(
        jax.random.normal(ks[3], (B, G2), dtype=jnp.float32), axis=-1)
    outs2 = jax.block_until_ready(my_loss_pairwise(
        out_label, out_exp2, true_label, true_exp2, weight_label,
        lambda_1, lambda_2, block_g=128))
    _check(outs2, _reference(out_label, out_exp2, true_label, true_exp2,
                             weight_label, lambda_1, lambda_2))

    print("KERNEL_OK")
</pallas_src>

<mosaic_0001>
module attributes {stable_mosaic.version = 11 : i64} {
  func.func @_loss_kernel(%arg0: i32, %arg1: memref<8x5xf32, #tpu.memory_space<vmem>>, %arg2: memref<8x1xi32, #tpu.memory_space<vmem>>, %arg3: memref<1x5xf32, #tpu.memory_space<vmem>>, %arg4: memref<8x256xf32, #tpu.memory_space<vmem>>, %arg5: memref<8x256xf32, #tpu.memory_space<vmem>>, %arg6: memref<1x4xf32, #tpu.memory_space<vmem>>, %arg7: memref<8x8xf32, #tpu.memory_space<vmem>>, %arg8: memref<8x1xf32, #tpu.memory_space<vmem>>) attributes {dimension_semantics = [#tpu.dimension_semantics<arbitrary>], iteration_bounds = array<i64: 1>, scalar_prefetch = 0 : i64, scratch_operands = 2 : i64, tpu.core_type = #tpu.core_type<tc>, window_params = [{pipeline_mode = #tpu.pipeline_mode<synchronous>, transform_indices = @transform_0, window_bounds = array<i64: 8, 5>}, {pipeline_mode = #tpu.pipeline_mode<synchronous>, transform_indices = @transform_1, window_bounds = array<i64: 8, 1>}, {pipeline_mode = #tpu.pipeline_mode<synchronous>, transform_indices = @transform_2, window_bounds = array<i64: 1, 5>}, {transform_indices = @transform_3, window_bounds = array<i64: 8, 256>}, {transform_indices = @transform_4, window_bounds = array<i64: 8, 256>}, {pipeline_mode = #tpu.pipeline_mode<synchronous>, transform_indices = @transform_5, window_bounds = array<i64: 1, 4>}]} {
    %c0_i32 = arith.constant 0 : i32
    %0 = arith.cmpi eq, %arg0, %c0_i32 : i32
    %1 = arith.extui %0 : i1 to i32
    %c0_i32_0 = arith.constant 0 : i32
    %2 = arith.cmpi ne, %1, %c0_i32_0 : i32
    scf.if %2 {
      %cst_17 = arith.constant 0.000000e+00 : f32
      %24 = vector.broadcast %cst_17 : f32 to vector<8x8xf32>
      %c0_18 = arith.constant 0 : index
      %c0_19 = arith.constant 0 : index
      %25 = vector.load %arg7[%c0_18, %c0_19] : memref<8x8xf32, #tpu.memory_space<vmem>>, vector<8x8xf32>
      tpu.vector_store %arg7[%c0_18, %c0_19], %24 {strides = array<i32>} : memref<8x8xf32, #tpu.memory_space<vmem>>, vector<8x8xf32>,
      %cst_20 = arith.constant 0.000000e+00 : f32
      %26 = vector.broadcast %cst_20 : f32 to vector<8x1xf32>
      %c0_21 = arith.constant 0 : index
      %c0_22 = arith.constant 0 : index
      %27 = vector.load %arg8[%c0_21, %c0_22] : memref<8x1xf32, #tpu.memory_space<vmem>>, vector<8x1xf32>
      tpu.vector_store %arg8[%c0_21, %c0_22], %26 {strides = array<i32>} : memref<8x1xf32, #tpu.memory_space<vmem>>, vector<8x1xf32>,
    } else {
    }
    %c0 = arith.constant 0 : index
    %c0_1 = arith.constant 0 : index
    %3 = vector.load %arg4[%c0, %c0_1] : memref<8x256xf32, #tpu.memory_space<vmem>>, vector<8x256xf32>
    %c0_2 = arith.constant 0 : index
    %c0_3 = arith.constant 0 : index
    %4 = vector.load %arg5[%c0_2, %c0_3] : memref<8x256xf32, #tpu.memory_space<vmem>>, vector<8x256xf32>
    %c0_4 = arith.constant 0 : index
    %c0_5 = arith.constant 0 : index
    %5 = vector.load %arg7[%c0_4, %c0_5] : memref<8x8xf32, #tpu.memory_space<vmem>>, vector<8x8xf32>
    %cst = arith.constant dense<0.000000e+00> : vector<8x8xf32>
    %6 = tpu.matmul %3, %3, %cst {dimension_numbers = #tpu.dot_dimension_numbers<[1], [1], [0], [0], [0, 0, 1, 0], [], []>} : vector<8x256xf32>, vector<8x256xf32>, vector<8x8xf32> -> vector<8x8xf32>
    %7 = arith.addf %5, %6 : vector<8x8xf32>
    %c0_6 = arith.constant 0 : index
    %c0_7 = arith.constant 0 : index
    %8 = vector.load %arg7[%c0_6, %c0_7] : memref<8x8xf32, #tpu.memory_space<vmem>>, vector<8x8xf32>
    tpu.vector_store %arg7[%c0_6, %c0_7], %7 {strides = array<i32>} : memref<8x8xf32, #tpu.memory_space<vmem>>, vector<8x8xf32>,
    %cst_8 = arith.constant 0.000000e+00 : f32
    %9 = vector.broadcast %cst_8 : f32 to vector<8x256xf32>
    %10 = arith.cmpf ogt, %4, %9 : vector<8x256xf32>
    %11 = math.log %4 : vector<8x256xf32>
    %12 = arith.subf %11, %3 : vector<8x256xf32>
    %13 = arith.mulf %4, %12 : vector<8x256xf32>
    %cst_9 = arith.constant 0.000000e+00 : f32
    %14 = vector.broadcast %cst_9 : f32 to vector<8x256xf32>
    %15 = arith.select %10, %13, %14 : vector<8x256xi1>, vector<8x256xf32>
    %c0_10 = arith.constant 0 : index
    %c0_11 = arith.constant 0 : index
    %16 = vector.load %arg8[%c0_10, %c0_11] : memref<8x1xf32, #tpu.memory_space<vmem>>, vector<8x1xf32>
    %cst_12 = arith.constant dense<0.000000e+00> : vector<8xf32>
    %17 = vector.multi_reduction <add>, %15, %cst_12 [1] : vector<8x256xf32> to vector<8xf32>
    %18 = vector.shape_cast %17 : vector<8xf32> to vector<8x1xf32>
    %19 = arith.addf %16, %18 : vector<8x1xf32>
    %c0_13 = arith.constant 0 : index
    %c0_14 = arith.constant 0 : index
    %20 = vector.load %arg8[%c0_13, %c0_14] : memref<8x1xf32, #tpu.memory_space<vmem>>, vector<8x1xf32>
    tpu.vector_store %arg8[%c0_13, %c0_14], %19 {strides = array<i32>} : memref<8x1xf32, #tpu.memory_space<vmem>>, vector<8x1xf32>,
    %c0_i32_15 = arith.constant 0 : i32
    %21 = arith.cmpi eq, %arg0, %c0_i32_15 : i32
    %22 = arith.extui %21 : i1 to i32
    %c0_i32_16 = arith.constant 0 : i32
    %23 = arith.cmpi ne, %22, %c0_i32_16 : i32
    scf.if %23 {
      %c0_17 = arith.constant 0 : index
      %c0_18 = arith.constant 0 : index
      %24 = vector.load %arg1[%c0_17, %c0_18] : memref<8x5xf32, #tpu.memory_space<vmem>>, vector<8x5xf32>
      %c0_19 = arith.constant 0 : index
      %c0_20 = arith.constant 0 : index
      %25 = vector.load %arg2[%c0_19, %c0_20] : memref<8x1xi32, #tpu.memory_space<vmem>>, vector<8x1xi32>
      %26 = tpu.iota {dimensions = array<i32: 1>} : vector<8x5xi32>
      %27 = vector.broadcast %25 : vector<8x1xi32> to vector<8x5xi32>
      %28 = arith.cmpi eq, %26, %27 : vector<8x5xi32>
      %29 = arith.extui %28 : vector<8x5xi1> to vector<8x5xi32>
      %30 = arith.sitofp %29 : vector<8x5xi32> to vector<8x5xf32>
      %cst_21 = arith.constant dense<0xFF800000> : vector<8xf32>
      %31 = vector.multi_reduction <maximumf>, %24, %cst_21 [1] : vector<8x5xf32> to vector<8xf32>
      %32 = vector.shape_cast %31 : vector<8xf32> to vector<8x1xf32>
      %33 = vector.broadcast %32 : vector<8x1xf32> to vector<8x5xf32>
      %34 = arith.subf %24, %33 : vector<8x5xf32>
      %35 = math.exp %34 : vector<8x5xf32>
      %cst_22 = arith.constant dense<0.000000e+00> : vector<8xf32>
      %36 = vector.multi_reduction <add>, %35, %cst_22 [1] : vector<8x5xf32> to vector<8xf32>
      %37 = vector.shape_cast %36 : vector<8xf32> to vector<8x1xf32>
      %38 = math.log %37 : vector<8x1xf32>
      %39 = vector.broadcast %38 : vector<8x1xf32> to vector<8x5xf32>
      %40 = arith.subf %34, %39 : vector<8x5xf32>
      %41 = arith.mulf %30, %40 : vector<8x5xf32>
      %cst_23 = arith.constant dense<0.000000e+00> : vector<8xf32>
      %42 = vector.multi_reduction <add>, %41, %cst_23 [1] : vector<8x5xf32> to vector<8xf32>
      %43 = vector.shape_cast %42 : vector<8xf32> to vector<8x1xf32>
      %c0_24 = arith.constant 0 : index
      %c0_25 = arith.constant 0 : index
      %44 = vector.load %arg3[%c0_24, %c0_25] : memref<1x5xf32, #tpu.memory_space<vmem>>, vector<1x5xf32>
      %45 = vector.broadcast %44 : vector<1x5xf32> to vector<8x5xf32>
      %46 = arith.mulf %30, %45 : vector<8x5xf32>
      %cst_26 = arith.constant dense<0.000000e+00> : vector<8xf32>
      %47 = vector.multi_reduction <add>, %46, %cst_26 [1] : vector<8x5xf32> to vector<8xf32>
      %48 = vector.shape_cast %47 : vector<8xf32> to vector<8x1xf32>
      %cst_27 = arith.constant 0.000000e+00 : f32
      %49 = vector.broadcast %cst_27 : f32 to vector<8x1xf32>
      %50 = arith.subf %49, %48 : vector<8x1xf32>
      %51 = arith.mulf %50, %43 : vector<8x1xf32>
      %cst_28 = arith.constant dense<0.000000e+00> : vector<1xf32>
      %52 = vector.multi_reduction <add>, %51, %cst_28 [0] : vector<8x1xf32> to vector<1xf32>
      %53 = vector.shape_cast %52 : vector<1xf32> to vector<1x1xf32>
      %cst_29 = arith.constant dense<0.000000e+00> : vector<1xf32>
      %54 = vector.multi_reduction <add>, %48, %cst_29 [0] : vector<8x1xf32> to vector<1xf32>
      %55 = vector.shape_cast %54 : vector<1xf32> to vector<1x1xf32>
      %56 = arith.divf %53, %55 : vector<1x1xf32>
      %c0_30 = arith.constant 0 : index
      %c0_31 = arith.constant 0 : index
      %57 = vector.load %arg8[%c0_30, %c0_31] : memref<8x1xf32, #tpu.memory_space<vmem>>, vector<8x1xf32>
      %cst_32 = arith.constant dense<0.000000e+00> : vector<1xf32>
      %58 = vector.multi_reduction <add>, %57, %cst_32 [0] : vector<8x1xf32> to vector<1xf32>
      %59 = vector.shape_cast %58 : vector<1xf32> to vector<1x1xf32>
      %cst_33 = arith.constant 1.250000e-01 : f32
      %60 = vector.broadcast %cst_33 : f32 to vector<1x1xf32>
      %61 = arith.mulf %59, %60 : vector<1x1xf32>
      %c0_34 = arith.constant 0 : index
      %c0_35 = arith.constant 0 : index
      %62 = vector.load %arg7[%c0_34, %c0_35] : memref<8x8xf32, #tpu.memory_space<vmem>>, vector<8x8xf32>
      %63 = tpu.iota {dimensions = array<i32: 0>} : vector<8x8xi32>
      %64 = tpu.iota {dimensions = array<i32: 1>} : vector<8x8xi32>
      %65 = arith.cmpi eq, %63, %64 : vector<8x8xi32>
      %66 = arith.extui %65 : vector<8x8xi1> to vector<8x8xi32>
      %67 = arith.sitofp %66 : vector<8x8xi32> to vector<8x8xf32>
      %68 = arith.mulf %62, %67 : vector<8x8xf32>
      %cst_36 = arith.constant dense<0.000000e+00> : vector<8xf32>
      %69 = vector.multi_reduction <add>, %68, %cst_36 [1] : vector<8x8xf32> to vector<8xf32>
      %70 = vector.shape_cast %69 : vector<8xf32> to vector<8x1xf32>
      %71 = arith.mulf %62, %67 : vector<8x8xf32>
      %cst_37 = arith.constant dense<0.000000e+00> : vector<8xf32>
      %72 = vector.multi_reduction <add>, %71, %cst_37 [0] : vector<8x8xf32> to vector<8xf32>
      %73 = vector.shape_cast %72 : vector<8xf32> to vector<1x8xf32>
      %cst_38 = arith.constant 0.000000e+00 : f32
      %74 = vector.broadcast %cst_38 : f32 to vector<8x1xf32>
      %75 = arith.maximumf %70, %74 : vector<8x1xf32>
      %76 = math.sqrt %75 : vector<8x1xf32>
      %cst_39 = arith.constant 9.99999997E-7 : f32
      %77 = vector.broadcast %cst_39 : f32 to vector<8x1xf32>
      %78 = arith.maximumf %76, %77 : vector<8x1xf32>
      %cst_40 = arith.constant 0.000000e+00 : f32
      %79 = vector.broadcast %cst_40 : f32 to vector<1x8xf32>
      %80 = arith.maximumf %73, %79 : vector<1x8xf32>
      %81 = math.sqrt %80 : vector<1x8xf32>
      %cst_41 = arith.constant 9.99999997E-7 : f32
      %82 = vector.broadcast %cst_41 : f32 to vector<1x8xf32>
      %83 = arith.maximumf %81, %82 : vector<1x8xf32>
      %84 = vector.broadcast %78 : vector<8x1xf32> to vector<8x8xf32>
      %85 = vector.broadcast %83 : vector<1x8xf32> to vector<8x8xf32>
      %86 = arith.mulf %84, %85 : vector<8x8xf32>
      %87 = arith.divf %62, %86 : vector<8x8xf32>
      %cst_42 = arith.constant dense<0.000000e+00> : vector<8x8xf32>
      %88 = tpu.matmul %30, %30, %cst_42 {dimension_numbers = #tpu.dot_dimension_numbers<[1], [1], [0], [0], [0, 0, 1, 0], [], []>} : vector<8x5xf32>, vector<8x5xf32>, vector<8x8xf32> -> vector<8x8xf32>
      %89 = arith.cmpi sgt, %64, %63 : vector<8x8xi32>
      %90 = arith.extui %89 : vector<8x8xi1> to vector<8x8xi32>
      %91 = arith.sitofp %90 : vector<8x8xi32> to vector<8x8xf32>
      %cst_43 = arith.constant 0.000000e+00 : f32
      %92 = vector.broadcast %cst_43 : f32 to vector<8x8xf32>
      %93 = arith.subf %92, %88 : vector<8x8xf32>
      %cst_44 = arith.constant 1.000000e-10 : f32
      %cst_45 = arith.constant 1.000000e+00 : f32
      %94 = vector.broadcast %cst_44 : f32 to vector<8x8xf32>
      %95 = arith.maximumf %94, %87 : vector<8x8xf32>
      %96 = vector.broadcast %cst_45 : f32 to vector<8x8xf32>
      %97 = arith.minimumf %96, %95 : vector<8x8xf32>
      %98 = math.log %97 : vector<8x8xf32>
      %99 = arith.mulf %93, %98 : vector<8x8xf32>
      %cst_46 = arith.constant 1.000000e+00 : f32
      %100 = vector.broadcast %cst_46 : f32 to vector<8x8xf32>
      %101 = arith.subf %100, %88 : vector<8x8xf32>
      %cst_47 = arith.constant 1.000000e+00 : f32
      %102 = vector.broadcast %cst_47 : f32 to vector<8x8xf32>
      %103 = arith.subf %102, %87 : vector<8x8xf32>
      %cst_48 = arith.constant 1.000000e-10 : f32
      %cst_49 = arith.constant 1.000000e+00 : f32
      %104 = vector.broadcast %cst_48 : f32 to vector<8x8xf32>
      %105 = arith.maximumf %104, %103 : vector<8x8xf32>
      %106 = vector.broadcast %cst_49 : f32 to vector<8x8xf32>
      %107 = arith.minimumf %106, %105 : vector<8x8xf32>
      %108 = math.log %107 : vector<8x8xf32>
      %109 = arith.mulf %101, %108 : vector<8x8xf32>
      %110 = arith.subf %99, %109 : vector<8x8xf32>
      %111 = arith.mulf %91, %110 : vector<8x8xf32>
      %cst_50 = arith.constant dense<0.000000e+00> : vector<8xf32>
      %112 = vector.multi_reduction <add>, %111, %cst_50 [1] : vector<8x8xf32> to vector<8xf32>
      %113 = vector.shape_cast %112 : vector<8xf32> to vector<8x1xf32>
      %cst_51 = arith.constant dense<0.000000e+00> : vector<1xf32>
      %114 = vector.multi_reduction <add>, %113, %cst_51 [0] : vector<8x1xf32> to vector<1xf32>
      %115 = vector.shape_cast %114 : vector<1xf32> to vector<1x1xf32>
      %cst_52 = arith.constant 1.562500e-02 : f32
      %116 = vector.broadcast %cst_52 : f32 to vector<1x1xf32>
      %117 = arith.mulf %115, %116 : vector<1x1xf32>
      %cst_53 = arith.constant 0.699999988 : f32
      %118 = vector.broadcast %cst_53 : f32 to vector<1x1xf32>
      %119 = arith.mulf %118, %61 : vector<1x1xf32>
      %120 = arith.addf %56, %119 : vector<1x1xf32>
      %cst_54 = arith.constant 3.000000e-01 : f32
      %121 = vector.broadcast %cst_54 : f32 to vector<1x1xf32>
      %122 = arith.mulf %121, %117 : vector<1x1xf32>
      %123 = arith.addf %120, %122 : vector<1x1xf32>
      %124 = tpu.iota {dimensions = array<i32: 1>} : vector<1x4xi32>
      %c0_i32_55 = arith.constant 0 : i32
      %125 = vector.broadcast %c0_i32_55 : i32 to vector<1x4xi32>
      %126 = arith.cmpi eq, %124, %125 : vector<1x4xi32>
      %cst_56 = arith.constant 0.000000e+00 : f32
      %127 = vector.shape_cast %123 : vector<1x1xf32> to vector<1x1xf32>
      %128 = vector.broadcast %127 : vector<1x1xf32> to vector<1x4xf32>
      %129 = vector.broadcast %cst_56 : f32 to vector<1x4xf32>
      %130 = arith.select %126, %128, %129 : vector<1x4xi1>, vector<1x4xf32>
      %c1_i32 = arith.constant 1 : i32
      %131 = vector.broadcast %c1_i32 : i32 to vector<1x4xi32>
      %132 = arith.cmpi eq, %124, %131 : vector<1x4xi32>
      %cst_57 = arith.constant 0.000000e+00 : f32
      %133 = vector.shape_cast %56 : vector<1x1xf32> to vector<1x1xf32>
      %134 = vector.broadcast %133 : vector<1x1xf32> to vector<1x4xf32>
      %135 = vector.broadcast %cst_57 : f32 to vector<1x4xf32>
      %136 = arith.select %132, %134, %135 : vector<1x4xi1>, vector<1x4xf32>
      %137 = arith.addf %130, %136 : vector<1x4xf32>
      %c2_i32 = arith.constant 2 : i32
      %138 = vector.broadcast %c2_i32 : i32 to vector<1x4xi32>
      %139 = arith.cmpi eq, %124, %138 : vector<1x4xi32>
      %cst_58 = arith.constant 0.000000e+00 : f32
      %140 = vector.shape_cast %61 : vector<1x1xf32> to vector<1x1xf32>
      %141 = vector.broadcast %140 : vector<1x1xf32> to vector<1x4xf32>
      %142 = vector.broadcast %cst_58 : f32 to vector<1x4xf32>
      %143 = arith.select %139, %141, %142 : vector<1x4xi1>, vector<1x4xf32>
      %144 = arith.addf %137, %143 : vector<1x4xf32>
      %c3_i32 = arith.constant 3 : i32
      %145 = vector.broadcast %c3_i32 : i32 to vector<1x4xi32>
      %146 = arith.cmpi eq, %124, %145 : vector<1x4xi32>
      %cst_59 = arith.constant 0.000000e+00 : f32
      %147 = vector.shape_cast %117 : vector<1x1xf32> to vector<1x1xf32>
      %148 = vector.broadcast %147 : vector<1x1xf32> to vector<1x4xf32>
      %149 = vector.broadcast %cst_59 : f32 to vector<1x4xf32>
      %150 = arith.select %146, %148, %149 : vector<1x4xi1>, vector<1x4xf32>
      %151 = arith.addf %144, %150 : vector<1x4xf32>
      %c0_60 = arith.constant 0 : index
      %c0_61 = arith.constant 0 : index
      %152 = vector.load %arg6[%c0_60, %c0_61] : memref<1x4xf32, #tpu.memory_space<vmem>>, vector<1x4xf32>
      tpu.vector_store %arg6[%c0_60, %c0_61], %151 {strides = array<i32>} : memref<1x4xf32, #tpu.memory_space<vmem>>, vector<1x4xf32>,
    } else {
    }
    return
  }
  func.func @transform_0(%arg0: i32) -> (i32, i32) {
    %c0_i32 = arith.constant 0 : i32
    %c0_i32_0 = arith.constant 0 : i32
    %c0_i32_1 = arith.constant 0 : i32
    return %c0_i32, %c0_i32_0 : i32, i32
  }
  func.func @transform_1(%arg0: i32) -> (i32, i32) {
    %c0_i32 = arith.constant 0 : i32
    %c0_i32_0 = arith.constant 0 : i32
    %c0_i32_1 = arith.constant 0 : i32
    return %c0_i32, %c0_i32_0 : i32, i32
  }
  func.func @transform_2(%arg0: i32) -> (i32, i32) {
    %c0_i32 = arith.constant 0 : i32
    %c0_i32_0 = arith.constant 0 : i32
    %c0_i32_1 = arith.constant 0 : i32
    return %c0_i32, %c0_i32_0 : i32, i32
  }
  func.func @transform_3(%arg0: i32) -> (i32, i32) {
    %c0_i32 = arith.constant 0 : i32
    %c0_i32_0 = arith.constant 0 : i32
    return %c0_i32, %arg0 : i32, i32
  }
  func.func @transform_4(%arg0: i32) -> (i32, i32) {
    %c0_i32 = arith.constant 0 : i32
    %c0_i32_0 = arith.constant 0 : i32
    return %c0_i32, %arg0 : i32, i32
  }
  func.func @transform_5(%arg0: i32) -> (i32, i32) {
    %c0_i32 = arith.constant 0 : i32
    %c0_i32_0 = arith.constant 0 : i32
    %c0_i32_1 = arith.constant 0 : i32
    return %c0_i32, %c0_i32_0 : i32, i32
  }
}

</mosaic_0001>

<llo_original>
// kernel: tpu_custom_call.1
$region0: #{tpu_custom_call.1}
  #allocation0 [shape = 'u32[]', space=smem, size = 0x4, offset = 0x4, fixed_abs, tag = 'smem constant byte address 0x4 - core index']
  #allocation1 [shape = 'u32[144,128]{1,0:T(1,128)}', space=vmem, size = 0x12000, scoped, tag = 'internal scratch']
  #allocation2 [shape = 'f32[8,8]{1,0:T(8,128)}', space=vmem, size = 0x1000, scoped, tag = 'scratch operand']
  #allocation3 [shape = 'f32[8,1]{1,0:T(8,128)}', space=vmem, size = 0x1000, scoped, tag = 'scratch operand']
  %s0 = inlined_call_operand.hbm [shape: f32[8,5], index: 0, kind: input, shape index: {}]
  %s1 = inlined_call_operand.vmem [shape: s32[8,1], index: 1, kind: input, shape index: {}]
  %s2 = inlined_call_operand.vmem [shape: f32[1,5], index: 2, kind: input, shape index: {}]
  %s3 = inlined_call_operand.vmem [shape: f32[8,256], index: 3, kind: input, shape index: {}]
  %s4 = inlined_call_operand.hbm [shape: f32[8,256], index: 4, kind: input, shape index: {}]
  %s5 = inlined_call_operand.hbm [shape: f32[1,4], index: 5, kind: output, shape index: {}]
  %s6 = sld [smem:[#allocation0]]
  $region46: #{tpu_custom_call.1} parent=0
    _
  %s8 = ssub.s32 1, %s6
  %s9 = scalar_select 0, %s8, %s6
  $region1: #{tpu_custom_call.1} parent=0
    #allocation4 [shape = 'u8[4096]{0}', space=vmem, size = 0x1000, scoped, tag = 'input window, operand 0, single buffered']
    #allocation5 [shape = 's32[1]{0}', space=sflag, size = 0x4, scoped, tag = 'scoped memory for tpu_custom_call.1']
    #allocation6 [shape = 's32[1]{0}', space=sflag, size = 0x4, scoped, tag = 'scoped memory for tpu_custom_call.1']
    #allocation7 [shape = 'u8[8192]{0}', space=vmem, size = 0x2000, scoped, tag = 'input window, operand 4, single buffered']
    #allocation8 [shape = 's32[1]{0}', space=sflag, size = 0x4, scoped, tag = 'scoped memory for tpu_custom_call.1']
    #allocation9 [shape = 'u8[512]{0}', space=vmem, size = 0x400, scoped, tag = 'output window, operand 0, single buffered']
    %10 = vsyncpa [#allocation5], 0
    %11 = vsyncpa [#allocation8], 0
    %12 = vsyncpa [#allocation6], 0
    // Predicated region
    $region2: #{tpu_custom_call.1} parent=1 // pred_check
      _
    $region3: #{tpu_custom_call.1} parent=1 // pred_check_branch
      %14 = sbr.rel (0) target = $region5
    $region4: #{tpu_custom_call.1} parent=1 // pred_region
      %s16 = ssub.s32 128, 128
      %17 = vsyncadd [#allocation5], %s16
      %s19 = sshll.u32 [#allocation4], 4
      %s20 = int_to_ptr.vmem [resolvable:$true] %s19
      %22 = dma.hbm_to_vmem [thread:$0]  %s0, 128, %s20, [#allocation5]
    $region5: #{tpu_custom_call.1} parent=1 // pred_fallthru
      _
    // Predicated region
    $region6: #{tpu_custom_call.1} parent=1 // pred_check
      _
    $region7: #{tpu_custom_call.1} parent=1 // pred_check_branch
      %24 = sbr.rel (0) target = $region9
    $region8: #{tpu_custom_call.1} parent=1 // pred_region
      _
    $region9: #{tpu_custom_call.1} parent=1 // pred_fallthru
      _
    // Predicated region
    $region10: #{tpu_custom_call.1} parent=1 // pred_check
      _
    $region11: #{tpu_custom_call.1} parent=1 // pred_check_branch
      %26 = sbr.rel (0) target = $region13
    $region12: #{tpu_custom_call.1} parent=1 // pred_region
      _
    $region13: #{tpu_custom_call.1} parent=1 // pred_fallthru
      _
    // Predicated region
    $region14: #{tpu_custom_call.1} parent=1 // pred_check
      _
    $region15: #{tpu_custom_call.1} parent=1 // pred_check_branch
      %28 = sbr.rel (0) target = $region17
    $region16: #{tpu_custom_call.1} parent=1 // pred_region
      _
    $region17: #{tpu_custom_call.1} parent=1 // pred_fallthru
      _
    // Predicated region
    $region18: #{tpu_custom_call.1} parent=1 // pred_check
      _
    $region19: #{tpu_custom_call.1} parent=1 // pred_check_branch
      %30 = sbr.rel (0) target = $region21
    $region20: #{tpu_custom_call.1} parent=1 // pred_region
      %s32 = ssub.s32 256, 256
      %33 = vsyncadd [#allocation8], %s32
      %s35 = sshll.u32 [#allocation7], 4
      %s36 = int_to_ptr.vmem [resolvable:$true] %s35
      %38 = dma.hbm_to_vmem [thread:$0]  %s4, 256, %s36, [#allocation8]
    $region21: #{tpu_custom_call.1} parent=1 // pred_fallthru
      _
    // Predicated region
    $region22: #{tpu_custom_call.1} parent=1 // pred_check
      _
    $region23: #{tpu_custom_call.1} parent=1 // pred_check_branch
      %40 = sbr.rel (0) target = $region25
    $region24: #{tpu_custom_call.1} parent=1 // pred_region
      %41 = dma.done [#allocation5], 128
    $region25: #{tpu_custom_call.1} parent=1 // pred_fallthru
      _
    // Predicated region
    $region26: #{tpu_custom_call.1} parent=1 // pred_check
      _
    $region27: #{tpu_custom_call.1} parent=1 // pred_check_branch
      %43 = sbr.rel (0) target = $region29
    $region28: #{tpu_custom_call.1} parent=1 // pred_region
      %44 = dma.done [#allocation8], 256
    $region29: #{tpu_custom_call.1} parent=1 // pred_fallthru
      _
    %p45 = scmp.eq.s32.totalorder 0, 0
    // Predicated region
    $region30: #{tpu_custom_call.1} parent=1 // pred_check
      %p46 = pneg %p45
    $region31: #{tpu_custom_call.1} parent=1 // pred_check_branch
      %48 = sbr.rel (%p46) target = $region33
    $region32: #{tpu_custom_call.1} parent=1 // pred_region
      %vm49 = vcmask 64512
      %50 = vst.msk [vmem:[#allocation2] sm:$0xff] %vm49, 0.0
      %vm51 = vcmask 7168
      %52 = vst.msk [vmem:[#allocation3] sm:$0xff] %vm51, 0.0
    $region33: #{tpu_custom_call.1} parent=1 // pred_fallthru
      _
    %v53 = vld [vmem:[%s3] sm:$0xff]
    %v54 = vld [vmem:[%s3 + $0x8] sm:$0xff]
    %v55 = vld [vmem:[#allocation7] sm:$0xff]
    %v56 = vld [vmem:[#allocation7 + $0x8] sm:$0xff]
    %v57 = vld [vmem:[#allocation2] sm:$0xff]
    %58 = vmatprep.subr.mxu0 %v54
    %59 = vmatpush1.xpose.msra.mxu0 %v53
    %60 = vmatprep.subr.mxu0 0.0
    %61 = vmatpush1.xpose.msra.mxu0 0.0
    %62 = vmatprep.subr.mxu0 0.0
    %63 = vmatpush1.xpose.msra.mxu0 0.0
    %64 = vmatprep.subr.mxu0 0.0
    %65 = vmatpush1.xpose.msra.mxu0 0.0
    %66 = vmatprep.subr.mxu0 0.0
    %67 = vmatpush1.xpose.msra.mxu0 0.0
    %68 = vmatprep.subr.mxu0 0.0
    %69 = vmatpush1.xpose.msra.mxu0 0.0
    %70 = vmatprep.subr.mxu0 0.0
    %71 = vmatpush1.xpose.msra.mxu0 0.0
    %72 = vmatprep.subr.mxu0 0.0
    %73 = vmatpush1.xpose.msra.mxu0 0.0
    %74 = vmatprep.subr.mxu0 0.0
    %75 = vmatpush1.xpose.msra.mxu0 0.0
    %76 = vmatprep.subr.mxu0 0.0
    %77 = vmatpush1.xpose.msra.mxu0 0.0
    %78 = vmatprep.subr.mxu0 0.0
    %79 = vmatpush1.xpose.msra.mxu0 0.0
    %80 = vmatprep.subr.mxu0 0.0
    %81 = vmatpush1.xpose.msra.mxu0 0.0
    %82 = vmatprep.subr.mxu0 0.0
    %83 = vmatpush1.xpose.msra.mxu0 0.0
    %84 = vmatprep.subr.mxu0 0.0
    %85 = vmatpush1.xpose.msra.mxu0 0.0
    %86 = vmatprep.subr.mxu0 0.0
    %87 = vmatpush1.xpose.msra.mxu0 0.0
    %88 = vmatprep.subr.mxu0 0.0
    %89 = vmatpush1.xpose.msra.mxu0 0.0
    %90 = vmatprep.subr.mxu0 0.0
    %91 = vmatpush1.xpose.msra.mxu0 0.0
    %92 = vmatprep.subr.mxu0 0.0
    %93 = vmatpush1.xpose.msra.mxu0 0.0
    %94 = vmatprep.subr.mxu0 0.0
    %95 = vmatpush1.xpose.msra.mxu0 0.0
    %96 = vmatprep.subr.mxu0 0.0
    %97 = vmatpush1.xpose.msra.mxu0 0.0
    %98 = vmatprep.subr.mxu0 0.0
    %99 = vmatpush1.xpose.msra.mxu0 0.0
    %100 = vmatprep.subr.mxu0 0.0
    %101 = vmatpush1.xpose.msra.mxu0 0.0
    %102 = vmatprep.subr.mxu0 0.0
    %103 = vmatpush1.xpose.msra.mxu0 0.0
    %104 = vmatprep.subr.mxu0 0.0
    %105 = vmatpush1.xpose.msra.mxu0 0.0
    %106 = vmatprep.subr.mxu0 0.0
    %107 = vmatpush1.xpose.msra.mxu0 0.0
    %108 = vmatprep.subr.mxu0 0.0
    %109 = vmatpush1.xpose.msra.mxu0 0.0
    %110 = vmatprep.subr.mxu0 0.0
    %111 = vmatpush1.xpose.msra.mxu0 0.0
    %112 = vmatprep.subr.mxu0 0.0
    %113 = vmatpush1.xpose.msra.mxu0 0.0
    %114 = vmatprep.subr.mxu0 0.0
    %115 = vmatpush1.xpose.msra.mxu0 0.0
    %116 = vmatprep.subr.mxu0 0.0
    %117 = vmatpush1.xpose.msra.mxu0 0.0
    %118 = vmatprep.subr.mxu0 0.0
    %119 = vmatpush1.xpose.msra.mxu0 0.0
    %120 = vmatprep.subr.mxu0 0.0
    %121 = vmatpush1.xpose.msra.mxu0 0.0
    %122 = vmatprep.mubr.f32.mxu0 %v54
    %123 = vmatmul.mubr.f32.gmra.mrb[0].mxu0 %v53
    %v124 = vpop.f32.mrb[0].mxu0
    %v125 = vadd.f32 0.0, %v124
    %v126 = vpop.f32.mrb[0].mxu0
    %127 = vdwg.mxu0
    %v128 = vadd.f32 %v57, %v125
    %vm129 = vcmask 64512
    %130 = vst.msk [vmem:[#allocation2] sm:$0xff] %vm129, %v128
    %vm131 = vcmp.gt.f32.partialorder %v55, 0.0
    %vm132 = vcmp.gt.f32.partialorder %v56, 0.0
    %v133 = vlog2.pop %v55
    %v134 = vmul.f32 %v133, 0.6931472
    %v135 = vlog2.pop %v56
    %v136 = vmul.f32 %v135, 0.6931472
    %v137 = vsub.f32 %v134, %v53
    %v138 = vsub.f32 %v136, %v54
    %v139 = vmul.f32 %v55, %v137
    %v140 = vmul.f32 %v56, %v138
    %v141 = vsel %vm131, %v139, 0.0
    %v142 = vsel %vm132, %v140, 0.0
    %v143 = vld [vmem:[#allocation3] sm:$0xff]
    %v144 = vadd.f32 %v141, %v142
    %145 = vadd.xlane.f32.xlu0 %v144
    %v146 = vpop.xlane.xlu0 %145
    %v147 = vadd.f32 %v143, %v146
    %vm148 = vcmask 7168
    %149 = vst.msk [vmem:[#allocation3] sm:$0xff] %vm148, %v147
    // Predicated region
    $region34: #{tpu_custom_call.1} parent=1 // pred_check
      %p150 = pneg %p45
    $region35: #{tpu_custom_call.1} parent=1 // pred_check_branch
      %152 = sbr.rel (%p150) target = $region37
    $region36: #{tpu_custom_call.1} parent=1 // pred_region
      %v153 = vld [vmem:[#allocation4] sm:$0xff]
      %v154 = vld [vmem:[%s1] sm:$0xff]
      %v155 = vlaneseq
      %v156 = vand.u32 %v155, 127
      %157 = vset.pattern.permute.xlu0 0
      %158 = vperm.xlu0 %157, %v154
      %v159 = vpop.permute.xlu0 %158
      %vm160 = vcmp.eq.s32.totalorder %v156, %v159
      %v161 = vsel %vm160, 1, 0
      %v162 = vcvt.s32.f32 %v161
      %vm163 = vcmask 39936
      %v164 = vsel %vm163, %v153, -inf
      %165 = vmax.xlane.f32.xlu0 %v164
      %v166 = vpop.xlane.xlu0 %165
      %v167 = vsub.f32 %v153, %v166
      %v168 = vmul.f32 %v167, 1.442695
      %v169 = vpow.pop %v168
      %v170 = vsel %vm163, %v169, 0.0
      %171 = vadd.xlane.f32.xlu0 %v170
      %v172 = vpop.xlane.xlu0 %171
      %v173 = vlog2.pop %v172
      %v174 = vmul.f32 %v173, 0.6931472
      %v175 = vsub.f32 %v167, %v174
      %v176 = vmul.f32 %v162, %v175
      %v177 = vsel %vm163, %v176, 0.0
      %178 = vadd.xlane.f32.xlu0 %v177
      %v179 = vpop.xlane.xlu0 %178
      %v180 = vld [vmem:[%s2] sm:$0x1]
      %v182 = vlaneseq
      %v183 = vshrl.u32 %v182, 7
      %v184 = vsub.s32 0, %v183
      %v185 = vrot.slane %v180, %v184
      %v187 = vmul.f32 %v162, %v185
      %v188 = vsel %vm163, %v187, 0.0
      %189 = vadd.xlane.f32.xlu0 %v188
      %v190 = vpop.xlane.xlu0 %189
      %v191 = vsub.f32 0.0, %v190
      %v192 = vmul.f32 %v191, %v179
      %v193 = vrot.slane %v192, 4
      %v194 = vadd.f32 %v192, %v193
      %v195 = vrot.slane %v194, 2
      %v196 = vadd.f32 %v194, %v195
      %v197 = vrot.slane %v196, 1
      %v198 = vadd.f32 %v196, %v197
      %v199 = vrot.slane %v190, 4
      %v200 = vadd.f32 %v190, %v199
      %v201 = vrot.slane %v200, 2
      %v202 = vadd.f32 %v200, %v201
      %v203 = vrot.slane %v202, 1
      %v204 = vadd.f32 %v202, %v203
      %v205 = vrcp.pop %v204
      %v206 = vmul.f32 %v198, %v205
      %v207 = vld [vmem:[#allocation3] sm:$0xff]
      %v208 = vsel %vm148, %v207, 0.0
      %v209 = vrot.slane %v208, 4
      %v210 = vadd.f32 %v208, %v209
      %v211 = vrot.slane %v210, 2
      %v212 = vadd.f32 %v210, %v211
      %v213 = vrot.slane %v212, 1
      %v214 = vadd.f32 %v212, %v213
      %v215 = vmul.f32 %v214, 0.125
      %v216 = vld [vmem:[#allocation2] sm:$0xff]
      %v217 = vlaneseq
      %v218 = vshrl.u32 %v217, 7
      %vm219 = vcmp.eq.s32.totalorder %v218, %v156
      %v220 = vsel %vm219, 1, 0
      %v221 = vcvt.s32.f32 %v220
      %v222 = vmul.f32 %v216, %v221
      %v223 = vsel %vm129, %v222, 0.0
      %224 = vadd.xlane.f32.xlu0 %v223
      %v225 = vpop.xlane.xlu0 %224
      %v226 = vrot.slane %v223, 4
      %v227 = vadd.f32 %v223, %v226
      %v228 = vrot.slane %v227, 2
      %v229 = vadd.f32 %v227, %v228
      %v230 = vrot.slane %v229, 1
      %v231 = vadd.f32 %v229, %v230
      %v232 = vmax.f32 %v225, 0.0
      %v233 = vrsqrt.pop %v232
      %v234 = vmul.f32 %v232, %v233
      %vm235 = vcmp.eq.f32.partialorder %v232, inf
      %v236 = vsel %vm235, %v232, %v234
      %vm237 = vcmp.eq.f32.partialorder %v232, 0.0
      %v238 = vand.u32 %v232, 2147483648
      %v239 = vsel %vm237, %v238, %v236
      %v240 = vmax.f32 %v239, 1e-06
      %v241 = vmax.f32 %v231, 0.0
      %v242 = vrsqrt.pop %v241
      %v243 = vmul.f32 %v241, %v242
      %vm244 = vcmp.eq.f32.partialorder %v241, inf
      %v245 = vsel %vm244, %v241, %v243
      %vm246 = vcmp.eq.f32.partialorder %v241, 0.0
      %v247 = vand.u32 %v241, 2147483648
      %v248 = vsel %vm246, %v247, %v245
      %v249 = vmax.f32 %v248, 1e-06
      %v250 = vmul.f32 %v240, %v249
      %v251 = vrcp.pop %v250
      %v252 = vmul.f32 %v216, %v251
      %v254 = vsel %vm163, %v162, 0
      %256 = vmatprep.subr.mxu0 0.0
      %257 = vmatpush1.xpose.msra.mxu0 %v254
      %258 = vmatprep.subr.mxu0 0.0
      %259 = vmatpush1.xpose.msra.mxu0 0.0
      %260 = vmatprep.subr.mxu0 0.0
      %261 = vmatpush1.xpose.msra.mxu0 0.0
      %262 = vmatprep.subr.mxu0 0.0
      %263 = vmatpush1.xpose.msra.mxu0 0.0
      %264 = vmatprep.subr.mxu0 0.0
      %265 = vmatpush1.xpose.msra.mxu0 0.0
      %266 = vmatprep.subr.mxu0 0.0
      %267 = vmatpush1.xpose.msra.mxu0 0.0
      %268 = vmatprep.subr.mxu0 0.0
      %269 = vmatpush1.xpose.msra.mxu0 0.0
      %270 = vmatprep.subr.mxu0 0.0
      %271 = vmatpush1.xpose.msra.mxu0 0.0
      %272 = vmatprep.subr.mxu0 0.0
      %273 = vmatpush1.xpose.msra.mxu0 0.0
      %274 = vmatprep.subr.mxu0 0.0
      %275 = vmatpush1.xpose.msra.mxu0 0.0
      %276 = vmatprep.subr.mxu0 0.0
      %277 = vmatpush1.xpose.msra.mxu0 0.0
      %278 = vmatprep.subr.mxu0 0.0
      %279 = vmatpush1.xpose.msra.mxu0 0.0
      %280 = vmatprep.subr.mxu0 0.0
      %281 = vmatpush1.xpose.msra.mxu0 0.0
      %282 = vmatprep.subr.mxu0 0.0
      %283 = vmatpush1.xpose.msra.mxu0 0.0
      %284 = vmatprep.subr.mxu0 0.0
      %285 = vmatpush1.xpose.msra.mxu0 0.0
      %286 = vmatprep.subr.mxu0 0.0
      %287 = vmatpush1.xpose.msra.mxu0 0.0
      %288 = vmatprep.subr.mxu0 0.0
      %289 = vmatpush1.xpose.msra.mxu0 0.0
      %290 = vmatprep.subr.mxu0 0.0
      %291 = vmatpush1.xpose.msra.mxu0 0.0
      %292 = vmatprep.subr.mxu0 0.0
      %293 = vmatpush1.xpose.msra.mxu0 0.0
      %294 = vmatprep.subr.mxu0 0.0
      %295 = vmatpush1.xpose.msra.mxu0 0.0
      %296 = vmatprep.subr.mxu0 0.0
      %297 = vmatpush1.xpose.msra.mxu0 0.0
      %298 = vmatprep.subr.mxu0 0.0
      %299 = vmatpush1.xpose.msra.mxu0 0.0
      %300 = vmatprep.subr.mxu0 0.0
      %301 = vmatpush1.xpose.msra.mxu0 0.0
      %302 = vmatprep.subr.mxu0 0.0
      %303 = vmatpush1.xpose.msra.mxu0 0.0
      %304 = vmatprep.subr.mxu0 0.0
      %305 = vmatpush1.xpose.msra.mxu0 0.0
      %306 = vmatprep.subr.mxu0 0.0
      %307 = vmatpush1.xpose.msra.mxu0 0.0
      %308 = vmatprep.subr.mxu0 0.0
      %309 = vmatpush1.xpose.msra.mxu0 0.0
      %310 = vmatprep.subr.mxu0 0.0
      %311 = vmatpush1.xpose.msra.mxu0 0.0
      %312 = vmatprep.subr.mxu0 0.0
      %313 = vmatpush1.xpose.msra.mxu0 0.0
      %314 = vmatprep.subr.mxu0 0.0
      %315 = vmatpush1.xpose.msra.mxu0 0.0
      %316 = vmatprep.subr.mxu0 0.0
      %317 = vmatpush1.xpose.msra.mxu0 0.0
      %318 = vmatprep.subr.mxu0 0.0
      %319 = vmatpush1.xpose.msra.mxu0 0.0
      %320 = vmatprep.mubr.f32.mxu0 0.0
      %321 = vmatmul.mubr.f32.gmra.mrb[0].mxu0 %v254
      %v322 = vpop.f32.mrb[0].mxu0
      %v323 = vadd.f32 0.0, %v322
      %v324 = vpop.f32.mrb[0].mxu0
      %325 = vdwg.mxu0
      %vm326 = vcmp.gt.s32.totalorder %v156, %v218
      %v327 = vsel %vm326, 1, 0
      %v328 = vcvt.s32.f32 %v327
      %v329 = vsub.f32 0.0, %v323
      %v330 = vmax.f32 %v252, 1e-10
      %v331 = vmin.f32 %v330, 1.0
      %v332 = vlog2.pop %v331
      %v333 = vmul.f32 %v332, 0.6931472
      %v334 = vmul.f32 %v329, %v333
      %v335 = vsub.f32 1.0, %v323
      %v336 = vsub.f32 1.0, %v252
      %v337 = vmax.f32 %v336, 1e-10
      %v338 = vmin.f32 %v337, 1.0
      %v339 = vlog2.pop %v338
      %v340 = vmul.f32 %v339, 0.6931472
      %v341 = vmul.f32 %v335, %v340
      %v342 = vsub.f32 %v334, %v341
      %v343 = vmul.f32 %v328, %v342
      %v344 = vsel %vm129, %v343, 0.0
      %345 = vadd.xlane.f32.xlu0 %v344
      %v346 = vpop.xlane.xlu0 %345
      %v347 = vrot.slane %v346, 4
      %v348 = vadd.f32 %v346, %v347
      %v349 = vrot.slane %v348, 2
      %v350 = vadd.f32 %v348, %v349
      %v351 = vrot.slane %v350, 1
      %v352 = vadd.f32 %v350, %v351
      %v353 = vmul.f32 %v352, 0.015625
      %v354 = vmul.f32 %v215, 0.7
      %v355 = vadd.f32 %v206, %v354
      %v356 = vmul.f32 %v353, 0.3
      %v357 = vadd.f32 %v355, %v356
      %vm358 = vcmp.eq.s32.totalorder %v156, 0
      %360 = vset.pattern.permute.xlu0 0
      %361 = vperm.xlu0 %360, %v357
      %v362 = vpop.permute.xlu0 %361
      %v364 = vsel %vm358, %v362, 0.0
      %vm365 = vcmp.eq.s32.totalorder %v156, 1
      %v366 = vsel %vm365, %v206, 0.0
      %v367 = vadd.f32 %v364, %v366
      %vm368 = vcmp.eq.s32.totalorder %v156, 2
      %370 = vset.pattern.permute.xlu0 0
      %371 = vperm.xlu0 %370, %v215
      %v372 = vpop.permute.xlu0 %371
      %v374 = vsel %vm368, %v372, 0.0
      %v375 = vadd.f32 %v367, %v374
      %vm376 = vcmp.eq.s32.totalorder %v156, 3
      %v377 = vsel %vm376, %v353, 0.0
      %v378 = vadd.f32 %v375, %v377
      %vm379 = vcmask 24576
      %380 = vst.msk [vmem:[#allocation9] sm:$0x1] %vm379, %v378
    $region37: #{tpu_custom_call.1} parent=1 // pred_fallthru
      _
    // Predicated region
    $region38: #{tpu_custom_call.1} parent=1 // pred_check
      _
    $region39: #{tpu_custom_call.1} parent=1 // pred_check_branch
      %382 = sbr.rel (0) target = $region41
    $region40: #{tpu_custom_call.1} parent=1 // pred_region
      %s384 = ssub.s32 16, 16
      %385 = vsyncadd [#allocation6], %s384
      %s387 = sshll.u32 [#allocation9], 4
      %s388 = int_to_ptr.vmem [resolvable:$true] %s387
      %390 = dma.vmem_to_hbm [thread:$0]  %s388, 16, %s5, [#allocation6]
    $region41: #{tpu_custom_call.1} parent=1 // pred_fallthru
      _
    // Predicated region
    $region42: #{tpu_custom_call.1} parent=1 // pred_check
      _
    $region43: #{tpu_custom_call.1} parent=1 // pred_check_branch
      %392 = sbr.rel (0) target = $region45
    $region44: #{tpu_custom_call.1} parent=1 // pred_region
      %393 = dma.done [#allocation6], 16
    $region45: #{tpu_custom_call.1} parent=1 // pred_fallthru
      _
    %394 = vsyncpa [#allocation5], 1
    %395 = vsyncpa [#allocation8], 1
    %396 = vsyncpa [#allocation6], 1

</llo_original>
